<compile_context>
chip_gen: v7x
topology: tpu7x:2x2x1
jax: 0.10.0
libtpu: 0.0.40
codegen_flags: <defaults>
</compile_context>

<pallas_src>
import functools
import math

import jax
import jax.numpy as jnp
from jax.experimental import pallas as pl
from jax.experimental.pallas import tpu as pltpu

_LANE = 128
_MAX_BLOCK_ROWS = 2048       # cap on batch-tile rows (multiple of 8/16/32)
_MAX_BLOCK_LANES = 8192      # cap on feature-tile lanes (multiple of 128)
_MAX_FOLD_BYTES = 1 << 20    # only fold batch->lanes if tiled weight stays tiny


def _sublane_multiple(dtype) -> int:
    itemsize = jnp.dtype(dtype).itemsize
    if itemsize >= 4:
        return 8
    if itemsize == 2:
        return 16
    return 32


def _vmem_budget_bytes():
    """(per-tile byte budget, vmem_limit_bytes) derived from the chip's VMEM."""
    try:
        capacity = int(pltpu.get_tpu_info().vmem_capacity_bytes)
    except Exception:
        capacity = 64 * 1024 * 1024
    vmem_limit = min(capacity // 2, 64 * 1024 * 1024)  # 64 MiB v5e/v6e, 32 MiB v7x
    # 2x double-buffered input + 2x double-buffered output + weight + headroom.
    max_tile = vmem_limit // 8
    return max_tile, vmem_limit


def _int_pow(x, d: int):
    """x ** d for a static non-negative Python int d, via square-and-multiply."""
    assert isinstance(d, int) and d >= 0, "degrees must be static non-negative ints"
    result = None
    base = x
    while d > 0:
        if d & 1:
            result = base if result is None else result * base
        d >>= 1
        if d:
            base = base * base
    return jnp.ones_like(x) if result is None else result


def _poly_kernel(x_ref, w_ref, o_ref, *, w0: float, d1: int, d2: int):
    # x_ref: (TB, TF) tile; w_ref: (1, TF) tile.  Weight polynomial is computed
    # in f32 at (1, TF) cost (free filler under the DMA roofline); the big
    # (TB, TF) multiply stays in the input dtype.
    w = w_ref[...].astype(jnp.float32)
    wprod = _int_pow(w + w0, d1) * _int_pow(w - w0, d2)
    x = x_ref[...]
    o_ref[...] = (x * wprod.astype(x.dtype)).astype(o_ref.dtype)


def poly_model_forward(x, weight, *, w0: float, d1: int, d2: int):
    """Pallas TPU implementation of PolyModel.forward.

    x:      (batch, in_features)
    weight: (out_features=1, in_features)
    """
    assert x.ndim == 2 and weight.ndim == 2, "expected 2-D input and weight"
    assert weight.shape[0] == 1, "out_features must be 1 for broadcastable forward"
    assert x.shape[-1] == weight.shape[-1], "in_features mismatch"
    assert isinstance(d1, int) and d1 >= 0, "d1 must be a static non-negative int"
    assert isinstance(d2, int) and d2 >= 0, "d2 must be a static non-negative int"

    B, F = x.shape
    out_dtype = jnp.result_type(x.dtype, weight.dtype)
    itemsize = jnp.dtype(x.dtype).itemsize
    sub = _sublane_multiple(x.dtype)
    max_tile_bytes, vmem_limit = _vmem_budget_bytes()

    # --- choose a lane-dense working layout without copying x through HBM ---
    x2, w2 = x, weight
    B2, F2 = B, F
    folded = False
    if F % _LANE != 0:
        # Try folding batch rows into the lane dim: (B, F) -> (B//k, k*F).
        k = _LANE // math.gcd(F, _LANE)
        if k > 1 and B % k == 0 and (k * F * itemsize) <= _MAX_FOLD_BYTES:
            x2 = x.reshape(B // k, k * F)            # contiguous -> no copy
            w2 = jnp.tile(weight, (1, k))            # tiny (1, k*F)
            B2, F2 = B // k, k * F
            folded = True
        # else: keep the full (un-padded) feature dim; edge lanes are masked.

    # --- tile sizes ---
    if F2 % _LANE == 0:
        TF = min(F2, _MAX_BLOCK_LANES)               # multiple of 128
    else:
        TF = F2                                      # full dim (legal block)

    rows = max(sub, (max_tile_bytes // max(TF * itemsize, 1)) // sub * sub)
    rows = min(rows, _MAX_BLOCK_ROWS)
    if B2 <= rows:
        TB = B2                                      # full dim -> always legal
    else:
        TB = rows                                    # multiple of sublane

    grid = (pl.cdiv(B2, TB), pl.cdiv(F2, TF))

    kernel = functools.partial(_poly_kernel, w0=float(w0), d1=int(d1), d2=int(d2))

    bytes_accessed = (
        x2.size * itemsize
        + B2 * F2 * jnp.dtype(out_dtype).itemsize
        + w2.size * jnp.dtype(w2.dtype).itemsize
    )
    cost = pl.CostEstimate(
        flops=int(x2.size), transcendentals=0, bytes_accessed=int(bytes_accessed)
    )

    out = pl.pallas_call(
        kernel,
        out_shape=jax.ShapeDtypeStruct((B2, F2), out_dtype),
        grid=grid,
        in_specs=[
            pl.BlockSpec((TB, TF), lambda i, j: (i, j)),   # streamed x tiles
            pl.BlockSpec((1, TF), lambda i, j: (0, j)),    # weight row (tiny)
        ],
        out_specs=pl.BlockSpec((TB, TF), lambda i, j: (i, j)),
        compiler_params=pltpu.CompilerParams(
            dimension_semantics=("parallel", "parallel"),  # elementwise; megacore ok
            vmem_limit_bytes=vmem_limit,
        ),
        cost_estimate=cost,
    )(x2, w2)

    if folded:
        out = out.reshape(B, F)                      # metadata-only
    return out


if __name__ == "__main__":
    # --- config (mirrors PolyModel1DConfig fields) ---
    batch = 2
    in_features = 32
    out_features = 1          # required so `input * w1 * w2` broadcasts as in PyTorch
    w0 = 0.5
    d1 = 2
    d2 = 3
    wmin, wmax = -1.0, 1.0
    dtype = jnp.float32

    key = jax.random.PRNGKey(0)
    kx, kw = jax.random.split(key)

    x = jax.random.normal(kx, (batch, in_features), dtype=dtype)
    # Deterministic weight init: uniform(wmin, wmax), shape (out, in) as in __init__.
    weight = jax.random.uniform(
        kw, (out_features, in_features), dtype=dtype, minval=wmin, maxval=wmax
    )

    out = poly_model_forward(x, weight, w0=w0, d1=d1, d2=d2)
    out = jax.block_until_ready(out)

    # Pure-JAX reference check of semantics.
    ref = x * ((weight + w0) ** d1) * ((weight - w0) ** d2)
    assert out.shape == (batch, in_features)
    assert jnp.allclose(out, ref, atol=1e-5, rtol=1e-5), "mismatch vs reference"

    print("KERNEL_OK")
</pallas_src>

<mosaic_0001>
module attributes {stable_mosaic.version = 11 : i64} {
  func.func @_poly_kernel(%arg0: i32, %arg1: i32, %arg2: memref<2x32xf32, #tpu.memory_space<vmem>>, %arg3: memref<1x32xf32, #tpu.memory_space<vmem>>, %arg4: memref<2x32xf32, #tpu.memory_space<vmem>>) attributes {dimension_semantics = [#tpu.dimension_semantics<parallel>, #tpu.dimension_semantics<parallel>], iteration_bounds = array<i64: 1, 1>, scalar_prefetch = 0 : i64, scratch_operands = 0 : i64, tpu.core_type = #tpu.core_type<tc>, window_params = [{transform_indices = @transform_0, window_bounds = array<i64: 2, 32>}, {transform_indices = @transform_1, window_bounds = array<i64: 1, 32>}, {transform_indices = @transform_2, window_bounds = array<i64: 2, 32>}]} {
    %c0 = arith.constant 0 : index
    %c0_0 = arith.constant 0 : index
    %0 = vector.load %arg3[%c0, %c0_0] : memref<1x32xf32, #tpu.memory_space<vmem>>, vector<1x32xf32>
    %cst = arith.constant 5.000000e-01 : f32
    %1 = vector.broadcast %cst : f32 to vector<1x32xf32>
    %2 = arith.addf %0, %1 : vector<1x32xf32>
    %3 = arith.mulf %2, %2 : vector<1x32xf32>
    %cst_1 = arith.constant 5.000000e-01 : f32
    %4 = vector.broadcast %cst_1 : f32 to vector<1x32xf32>
    %5 = arith.subf %0, %4 : vector<1x32xf32>
    %6 = arith.mulf %5, %5 : vector<1x32xf32>
    %7 = arith.mulf %5, %6 : vector<1x32xf32>
    %8 = arith.mulf %3, %7 : vector<1x32xf32>
    %c0_2 = arith.constant 0 : index
    %c0_3 = arith.constant 0 : index
    %9 = vector.load %arg2[%c0_2, %c0_3] : memref<2x32xf32, #tpu.memory_space<vmem>>, vector<2x32xf32>
    %10 = vector.broadcast %8 : vector<1x32xf32> to vector<2x32xf32>
    %11 = arith.mulf %9, %10 : vector<2x32xf32>
    %c0_4 = arith.constant 0 : index
    %c0_5 = arith.constant 0 : index
    %12 = vector.load %arg4[%c0_4, %c0_5] : memref<2x32xf32, #tpu.memory_space<vmem>>, vector<2x32xf32>
    tpu.vector_store %arg4[%c0_4, %c0_5], %11 {strides = array<i32>} : memref<2x32xf32, #tpu.memory_space<vmem>>, vector<2x32xf32>,
    return
  }
  func.func @transform_0(%arg0: i32, %arg1: i32) -> (i32, i32) {
    %c0_i32 = arith.constant 0 : i32
    return %arg0, %arg1 : i32, i32
  }
  func.func @transform_1(%arg0: i32, %arg1: i32) -> (i32, i32) {
    %c0_i32 = arith.constant 0 : i32
    %c0_i32_0 = arith.constant 0 : i32
    return %c0_i32, %arg1 : i32, i32
  }
  func.func @transform_2(%arg0: i32, %arg1: i32) -> (i32, i32) {
    %c0_i32 = arith.constant 0 : i32
    return %arg0, %arg1 : i32, i32
  }
}

</mosaic_0001>

<llo_original>
// kernel: tpu_custom_call.1
$region0: #{tpu_custom_call.1}
  #allocation0 [shape = 'u32[]', space=smem, size = 0x4, offset = 0x4, fixed_abs, tag = 'smem constant byte address 0x4 - core index']
  #allocation1 [shape = 'u32[144,128]{1,0:T(1,128)}', space=vmem, size = 0x12000, scoped, tag = 'internal scratch']
  %s0 = inlined_call_operand.hbm [shape: f32[2,32], index: 0, kind: input, shape index: {}]
  %s1 = inlined_call_operand.vmem [shape: f32[1,32], index: 1, kind: input, shape index: {}]
  %s2 = inlined_call_operand.hbm [shape: f32[2,32], index: 2, kind: output, shape index: {}]
  %s3 = sld [smem:[#allocation0]]
  $region22: #{tpu_custom_call.1} parent=0
    _
  %s5 = ssub.s32 1, %s3
  %s6 = scalar_select 0, %s5, %s3
  $region1: #{tpu_custom_call.1} parent=0
    #allocation2 [shape = 'u8[1024]{0}', space=vmem, size = 0x400, scoped, tag = 'input window, operand 0, single buffered']
    #allocation3 [shape = 's32[1]{0}', space=sflag, size = 0x4, scoped, tag = 'scoped memory for tpu_custom_call.1']
    #allocation4 [shape = 's32[1]{0}', space=sflag, size = 0x4, scoped, tag = 'scoped memory for tpu_custom_call.1']
    #allocation5 [shape = 'u8[1024]{0}', space=vmem, size = 0x400, scoped, tag = 'output window, operand 0, single buffered']
    %7 = vsyncpa [#allocation3], 0
    %8 = vsyncpa [#allocation4], 0
    // Predicated region
    $region2: #{tpu_custom_call.1} parent=1 // pred_check
      _
    $region3: #{tpu_custom_call.1} parent=1 // pred_check_branch
      %10 = sbr.rel (0) target = $region5
    $region4: #{tpu_custom_call.1} parent=1 // pred_region
      %s12 = ssub.s32 32, 32
      %13 = vsyncadd [#allocation3], %s12
      %s15 = sshll.u32 [#allocation2], 4
      %s16 = int_to_ptr.vmem [resolvable:$true] %s15
      %18 = dma.hbm_to_vmem [thread:$0]  %s0, 32, %s16, [#allocation3]
    $region5: #{tpu_custom_call.1} parent=1 // pred_fallthru
      _
    // Predicated region
    $region6: #{tpu_custom_call.1} parent=1 // pred_check
      _
    $region7: #{tpu_custom_call.1} parent=1 // pred_check_branch
      %20 = sbr.rel (0) target = $region9
    $region8: #{tpu_custom_call.1} parent=1 // pred_region
      _
    $region9: #{tpu_custom_call.1} parent=1 // pred_fallthru
      _
    // Predicated region
    $region10: #{tpu_custom_call.1} parent=1 // pred_check
      _
    $region11: #{tpu_custom_call.1} parent=1 // pred_check_branch
      %22 = sbr.rel (0) target = $region13
    $region12: #{tpu_custom_call.1} parent=1 // pred_region
      %23 = dma.done [#allocation3], 32
    $region13: #{tpu_custom_call.1} parent=1 // pred_fallthru
      _
    %v24 = vld [vmem:[%s1] sm:$0x1]
    %v25 = vadd.f32 %v24, 0.5
    %v26 = vmul.f32 %v25, %v25
    %v27 = vsub.f32 %v24, 0.5
    %v28 = vmul.f32 %v27, %v27
    %v29 = vmul.f32 %v27, %v28
    %v30 = vmul.f32 %v26, %v29
    %v31 = vld [vmem:[#allocation2] sm:$0x3]
    %v33 = vlaneseq
    %v34 = vshrl.u32 %v33, 7
    %v35 = vsub.s32 0, %v34
    %v36 = vrot.slane %v30, %v35
    %v38 = vmul.f32 %v31, %v36
    %vm39 = vcmask 254976
    %40 = vst.msk [vmem:[#allocation5] sm:$0x3] %vm39, %v38
    // Predicated region
    $region14: #{tpu_custom_call.1} parent=1 // pred_check
      _
    $region15: #{tpu_custom_call.1} parent=1 // pred_check_branch
      %42 = sbr.rel (0) target = $region17
    $region16: #{tpu_custom_call.1} parent=1 // pred_region
      %s44 = ssub.s32 32, 32
      %45 = vsyncadd [#allocation4], %s44
      %s47 = sshll.u32 [#allocation5], 4
      %s48 = int_to_ptr.vmem [resolvable:$true] %s47
      %50 = dma.vmem_to_hbm [thread:$0]  %s48, 32, %s2, [#allocation4]
    $region17: #{tpu_custom_call.1} parent=1 // pred_fallthru
      _
    // Predicated region
    $region18: #{tpu_custom_call.1} parent=1 // pred_check
      _
    $region19: #{tpu_custom_call.1} parent=1 // pred_check_branch
      %52 = sbr.rel (0) target = $region21
    $region20: #{tpu_custom_call.1} parent=1 // pred_region
      %53 = dma.done [#allocation4], 32
    $region21: #{tpu_custom_call.1} parent=1 // pred_fallthru
      _
    %54 = vsyncpa [#allocation3], 1
    %55 = vsyncpa [#allocation4], 1

</llo_original>
